<compile_context>
chip_gen: v7x
topology: tpu7x:2x2x1
jax: 0.10.0
libtpu: 0.0.40
codegen_flags: <defaults>
</compile_context>

<pallas_src>
import functools
import re

import jax
import jax.numpy as jnp
from jax.experimental import pallas as pl
from jax.experimental.pallas import tpu as pltpu

LN_EPS = 1e-5  # PyTorch nn.LayerNorm default


def _round_up(a, b):
    return (a + b - 1) // b * b


def _tpu_generation():
    """Best-effort TPU generation (5, 6, 7, ...); 0 if unknown."""
    try:
        kind = jax.devices()[0].device_kind.lower()
    except Exception:
        return 0
    m = re.search(r"v(\d+)", kind)
    return int(m.group(1)) if m else 0


def _vmem_capacity_bytes():
    """Physical per-core VMEM; conservative 64 MiB fallback."""
    try:
        cap = int(pltpu.get_tpu_info().vmem_capacity_bytes)
        if cap > 0:
            return cap
    except Exception:
        pass
    gen = _tpu_generation()
    if gen >= 7:
        return 64 << 20
    if gen in (4, 5, 6):
        return 128 << 20
    return 64 << 20


# ----------------------------------------------------------------------------- kernels


def ffn_kernel_resident(x_ref, g_ref, beta_ref, w1_ref, b1_ref, w2_ref, b2_ref, o_ref,
                        *, bf16_elem):
    """1-D grid over row tiles; W1/W2 are VMEM-resident (constant index_map)."""
    # LayerNorm in f32.
    x = x_ref[...].astype(jnp.float32)
    mean = jnp.mean(x, axis=-1, keepdims=True)
    var = jnp.mean((x - mean) ** 2, axis=-1, keepdims=True)
    xn = (x - mean) * jax.lax.rsqrt(var + LN_EPS)
    xn = xn * g_ref[...].astype(jnp.float32) + beta_ref[...].astype(jnp.float32)
    xn = xn.astype(jnp.bfloat16)                       # bf16 MXU operand

    # Linear1 (f32 accumulation) -> bias -> tanh GELU -> Linear2 -> bias.
    h = jnp.dot(xn, w1_ref[...], preferred_element_type=jnp.float32)
    if bf16_elem:   # v6e/v7x: packed bf16 VALU/EUP halves the elementwise work
        p = jax.nn.gelu(h.astype(jnp.bfloat16) + b1_ref[...].astype(jnp.bfloat16),
                        approximate=True)
    else:           # v5e / unknown: keep elementwise in f32 (no bf16 VALU)
        p = jax.nn.gelu(h + b1_ref[...].astype(jnp.float32),
                        approximate=True).astype(jnp.bfloat16)
    y = jnp.dot(p, w2_ref[...], preferred_element_type=jnp.float32)
    y = y + b2_ref[...].astype(jnp.float32)
    o_ref[...] = y.astype(o_ref.dtype)


def ffn_kernel_chunked(x_ref, g_ref, beta_ref, w1_ref, b1_ref, w2_ref, b2_ref, o_ref,
                       xn_ref, acc_ref, *, bf16_elem):
    """2-D grid (row tiles, hidden chunks); hidden chunks stream, accumulate in f32."""
    k = pl.program_id(1)

    @pl.when(k == 0)
    def _init():
        x = x_ref[...].astype(jnp.float32)
        mean = jnp.mean(x, axis=-1, keepdims=True)
        var = jnp.mean((x - mean) ** 2, axis=-1, keepdims=True)
        xn = (x - mean) * jax.lax.rsqrt(var + LN_EPS)
        xn = xn * g_ref[...].astype(jnp.float32) + beta_ref[...].astype(jnp.float32)
        xn_ref[...] = xn.astype(xn_ref.dtype)          # bf16 cache feeding the MXU
        # Fold the output bias into the accumulator init.
        acc_ref[...] = jnp.zeros(acc_ref.shape, jnp.float32) + b2_ref[...].astype(jnp.float32)

    h = jnp.dot(xn_ref[...], w1_ref[...], preferred_element_type=jnp.float32)
    if bf16_elem:
        p = jax.nn.gelu(h.astype(jnp.bfloat16) + b1_ref[...].astype(jnp.bfloat16),
                        approximate=True)
    else:
        p = jax.nn.gelu(h + b1_ref[...].astype(jnp.float32),
                        approximate=True).astype(jnp.bfloat16)
    acc_ref[...] += jnp.dot(p, w2_ref[...], preferred_element_type=jnp.float32)

    @pl.when(k == pl.num_programs(1) - 1)
    def _finalize():
        o_ref[...] = acc_ref[...].astype(o_ref.dtype)


# -------------------------------------------------------------------- tile selection


def _vmem_resident_bytes(tm, dim, hidden, io_bytes, bf16_elem):
    wb = 2  # bf16 weights
    weights = 2 * 2 * dim * hidden * wb                # W1 + W2, double-buffered by default
    params = 2 * (3 * dim + hidden) * 4                # gamma/beta/b2 + b1 (f32), double-buffered
    io = 2 * tm * dim * 2 * io_bytes                   # x + out row tiles, double-buffered
    h_bytes = 2 if bf16_elem else 4
    interm = (tm * dim * (4 + 2)                       # f32 LN temp + bf16 xn
              + tm * hidden * (4 + h_bytes))           # f32 matmul1 result + GELU value
    return weights + params + io + interm


def _vmem_chunked_bytes(tm, dim, th, io_bytes, bf16_elem):
    wb = 2
    per_step = (tm * dim * io_bytes                    # x row tile
                + (3 * dim + th) * 4                   # gamma, beta, b2, b1 chunk
                + dim * th * wb + th * dim * wb        # W1 / W2 chunks
                + tm * dim * io_bytes)                 # out row tile
    scratch = tm * dim * (2 + 4)                       # bf16 xn cache + f32 accumulator
    h_bytes = 2 if bf16_elem else 4
    interm = tm * dim * 4 + tm * th * (4 + h_bytes)    # LN temp + matmul1 result + GELU value
    return 2 * per_step + scratch + interm


def _select_tiles(M, dim, hidden, tm_req, budget, io_bytes, bf16_elem):
    """Pick (tm, th, resident, est): prefer keeping W1/W2 VMEM-resident, else chunk hidden."""
    tm_cap = max(16, _round_up(M, 16))
    tm_cands, t = [], max(16, min(_round_up(tm_req, 16), tm_cap))
    while True:
        tm_cands.append(t)
        nxt = max(16, _round_up(t // 2, 16))
        if nxt == t:
            break
        t = nxt

    for t in tm_cands:                                 # weight-resident if at all possible
        est = _vmem_resident_bytes(t, dim, hidden, io_bytes, bf16_elem)
        if est <= budget:
            return t, hidden, True, est

    th_cands = [d for d in range(hidden - 1, 0, -1) if hidden % d == 0 and d % 128 == 0]
    if not th_cands:
        th_cands = [hidden]
    for t in tm_cands:                                 # stream hidden chunks
        for d in th_cands:
            est = _vmem_chunked_bytes(t, dim, d, io_bytes, bf16_elem)
            if est <= budget:
                return t, d, d == hidden, est
    t, d = tm_cands[-1], th_cands[-1]                  # last resort: smallest tiles
    return t, d, d == hidden, _vmem_chunked_bytes(t, dim, d, io_bytes, bf16_elem)


# ----------------------------------------------------------------------------- wrapper


@functools.partial(jax.jit, static_argnames=("tm", "th"))
def feed_forward(x, gamma, beta, w1, b1, w2, b2, *, tm=None, th=None):
    """FeedForward forward pass (inference).  x: (B, N, dim) -> (B, N, dim)."""
    B, N, dim = x.shape
    hidden = w1.shape[1]
    M = B * N

    gen = _tpu_generation()
    capacity = _vmem_capacity_bytes()
    headroom = (16 << 20) if capacity <= (64 << 20) else (28 << 20)   # ~48 MiB v7x, ~100 MiB v5e/v6e
    budget = max(capacity - headroom, 24 << 20)
    bf16_elem = gen >= 6          # bf16 VALU/EUP elementwise only on v6e/v7x

    io_bytes = x.dtype.itemsize
    tm_req = tm if tm is not None else (256 if (gen >= 7 or gen == 0) else 512)

    if th is not None:
        assert hidden % th == 0 and (th % 128 == 0 or th == hidden), \
            "th must divide hidden and be a multiple of 128 (or equal hidden)"
        tm_sel = max(16, min(_round_up(tm_req, 16), _round_up(M, 16)))
        th_sel = th
        resident = (th_sel == hidden)
        est = (_vmem_resident_bytes(tm_sel, dim, hidden, io_bytes, bf16_elem) if resident
               else _vmem_chunked_bytes(tm_sel, dim, th_sel, io_bytes, bf16_elem))
    else:
        tm_sel, th_sel, resident, est = _select_tiles(
            M, dim, hidden, tm_req, budget, io_bytes, bf16_elem)

    M_pad = _round_up(M, tm_sel)
    x2 = x.reshape(M, dim)
    if M_pad != M:
        x2 = jnp.pad(x2, ((0, M_pad - M), (0, 0)))

    # bf16 weights -> native MXU path (f32 accumulation via preferred_element_type).
    w1c = w1.astype(jnp.bfloat16)
    w2c = w2.astype(jnp.bfloat16)
    # 1-D params as (1, feat) rows so they map onto (sublane, lane) vregs.
    g2 = gamma.reshape(1, dim).astype(jnp.float32)
    be2 = beta.reshape(1, dim).astype(jnp.float32)
    b1r = b1.reshape(1, hidden).astype(jnp.float32)
    b2r = b2.reshape(1, dim).astype(jnp.float32)

    vmem_limit = int(min(max(est + (8 << 20), 32 << 20), capacity - (4 << 20)))

    if resident:
        grid = (M_pad // tm_sel,)
        out = pl.pallas_call(
            functools.partial(ffn_kernel_resident, bf16_elem=bf16_elem),
            out_shape=jax.ShapeDtypeStruct((M_pad, dim), x.dtype),
            grid=grid,
            in_specs=[
                pl.BlockSpec((tm_sel, dim), lambda i: (i, 0)),        # x row tile
                pl.BlockSpec((1, dim), lambda i: (0, 0)),             # gamma
                pl.BlockSpec((1, dim), lambda i: (0, 0)),             # beta
                pl.BlockSpec((dim, hidden), lambda i: (0, 0)),        # W1 (VMEM-resident)
                pl.BlockSpec((1, hidden), lambda i: (0, 0)),          # b1
                pl.BlockSpec((hidden, dim), lambda i: (0, 0)),        # W2 (VMEM-resident)
                pl.BlockSpec((1, dim), lambda i: (0, 0)),             # b2
            ],
            out_specs=pl.BlockSpec((tm_sel, dim), lambda i: (i, 0)),
            compiler_params=pltpu.CompilerParams(
                dimension_semantics=("parallel",),
                vmem_limit_bytes=vmem_limit,
            ),
        )(x2, g2, be2, w1c, b1r, w2c, b2r)
    else:
        kt = hidden // th_sel
        grid = (M_pad // tm_sel, kt)

        def serp(i, k):
            # Serpentine hidden-chunk order: reversed on odd row tiles so the last W1/W2
            # block of row tile i equals the first of row tile i+1 (Pallas skips the DMA).
            parity = i % 2
            return k + parity * (kt - 1 - 2 * k)

        out = pl.pallas_call(
            functools.partial(ffn_kernel_chunked, bf16_elem=bf16_elem),
            out_shape=jax.ShapeDtypeStruct((M_pad, dim), x.dtype),
            grid=grid,
            in_specs=[
                pl.BlockSpec((tm_sel, dim), lambda i, k: (i, 0)),           # x row tile
                pl.BlockSpec((1, dim), lambda i, k: (0, 0)),                # gamma
                pl.BlockSpec((1, dim), lambda i, k: (0, 0)),                # beta
                pl.BlockSpec((dim, th_sel), lambda i, k: (0, serp(i, k))),  # W1 chunk (serpentine)
                pl.BlockSpec((1, th_sel), lambda i, k: (0, serp(i, k))),    # b1 chunk (same order)
                pl.BlockSpec((th_sel, dim), lambda i, k: (serp(i, k), 0)),  # W2 chunk (serpentine)
                pl.BlockSpec((1, dim), lambda i, k: (0, 0)),                # b2
            ],
            out_specs=pl.BlockSpec((tm_sel, dim), lambda i, k: (i, 0)),
            scratch_shapes=[
                pltpu.VMEM((tm_sel, dim), jnp.bfloat16),   # cached LayerNorm output
                pltpu.VMEM((tm_sel, dim), jnp.float32),    # second-matmul f32 accumulator
            ],
            compiler_params=pltpu.CompilerParams(
                dimension_semantics=("parallel", "arbitrary"),
                vmem_limit_bytes=vmem_limit,
            ),
        )(x2, g2, be2, w1c, b1r, w2c, b2r)

    return out[:M].reshape(B, N, dim)


def reference(x, gamma, beta, w1, b1, w2, b2):
    """Pure-f32 reference matching the PyTorch module (exact erf GELU, dropout = identity)."""
    xf = x.astype(jnp.float32)
    mean = jnp.mean(xf, axis=-1, keepdims=True)
    var = jnp.mean((xf - mean) ** 2, axis=-1, keepdims=True)
    xn = (xf - mean) * jax.lax.rsqrt(var + LN_EPS) * gamma + beta
    h = jax.nn.gelu(jnp.dot(xn, w1, precision=jax.lax.Precision.HIGHEST) + b1,
                    approximate=False)
    y = jnp.dot(h, w2, precision=jax.lax.Precision.HIGHEST) + b2
    return y.astype(x.dtype)


if __name__ == "__main__":
    DIM, HID = 128, 512

    key = jax.random.PRNGKey(0)
    kx, kw1, kb1, kw2, kb2, kg, kb, kx2 = jax.random.split(key, 8)

    # Deterministic parameter init (synthetic, not a checkpoint load).
    gamma = 1.0 + 0.1 * jax.random.normal(kg, (DIM,), jnp.float32)
    beta = 0.1 * jax.random.normal(kb, (DIM,), jnp.float32)
    w1 = jax.random.normal(kw1, (DIM, HID), jnp.float32) * (1.0 / jnp.sqrt(DIM))
    b1 = 0.01 * jax.random.normal(kb1, (HID,), jnp.float32)
    w2 = jax.random.normal(kw2, (HID, DIM), jnp.float32) * (1.0 / jnp.sqrt(HID))
    b2 = 0.01 * jax.random.normal(kb2, (DIM,), jnp.float32)

    # Path 1: weight-resident 1-D grid (auto-selected at these sizes).
    x = jax.random.normal(kx, (2, 8, DIM), dtype=jnp.float32)
    out = jax.block_until_ready(feed_forward(x, gamma, beta, w1, b1, w2, b2))
    ref = reference(x, gamma, beta, w1, b1, w2, b2)
    assert out.shape == ref.shape == (2, 8, DIM)
    err = float(jnp.max(jnp.abs(out.astype(jnp.float32) - ref.astype(jnp.float32))))
    # bf16 MXU/elementwise + tanh GELU vs exact-f32 erf reference -> small nonzero deviation.
    assert err < 6e-2, f"resident path max abs err {err}"

    # Path 2: chunked hidden reduction with serpentine weight streaming, forced via th < hidden;
    # multiple row tiles (M=128, tm=64) so the odd-tile reversal is actually exercised.
    x2 = jax.random.normal(kx2, (2, 64, DIM), dtype=jnp.float32)
    out2 = jax.block_until_ready(
        feed_forward(x2, gamma, beta, w1, b1, w2, b2, tm=64, th=256))
    ref2 = reference(x2, gamma, beta, w1, b1, w2, b2)
    assert out2.shape == ref2.shape == (2, 64, DIM)
    err2 = float(jnp.max(jnp.abs(out2.astype(jnp.float32) - ref2.astype(jnp.float32))))
    assert err2 < 6e-2, f"chunked path max abs err {err2}"

    print("KERNEL_OK")
</pallas_src>

<mosaic_0001>
module attributes {stable_mosaic.version = 11 : i64} {
  func.func @ffn_kernel_resident(%arg0: i32, %arg1: memref<16x128xf32, #tpu.memory_space<vmem>>, %arg2: memref<1x128xf32, #tpu.memory_space<vmem>>, %arg3: memref<1x128xf32, #tpu.memory_space<vmem>>, %arg4: memref<128x512xbf16, #tpu.memory_space<vmem>>, %arg5: memref<1x512xf32, #tpu.memory_space<vmem>>, %arg6: memref<512x128xbf16, #tpu.memory_space<vmem>>, %arg7: memref<1x128xf32, #tpu.memory_space<vmem>>, %arg8: memref<16x128xf32, #tpu.memory_space<vmem>>) attributes {dimension_semantics = [#tpu.dimension_semantics<parallel>], iteration_bounds = array<i64: 1>, scalar_prefetch = 0 : i64, scratch_operands = 0 : i64, tpu.core_type = #tpu.core_type<tc>, window_params = [{transform_indices = @transform_0, window_bounds = array<i64: 16, 128>}, {pipeline_mode = #tpu.pipeline_mode<synchronous>, transform_indices = @transform_1, window_bounds = array<i64: 1, 128>}, {pipeline_mode = #tpu.pipeline_mode<synchronous>, transform_indices = @transform_2, window_bounds = array<i64: 1, 128>}, {pipeline_mode = #tpu.pipeline_mode<synchronous>, transform_indices = @transform_3, window_bounds = array<i64: 128, 512>}, {pipeline_mode = #tpu.pipeline_mode<synchronous>, transform_indices = @transform_4, window_bounds = array<i64: 1, 512>}, {pipeline_mode = #tpu.pipeline_mode<synchronous>, transform_indices = @transform_5, window_bounds = array<i64: 512, 128>}, {pipeline_mode = #tpu.pipeline_mode<synchronous>, transform_indices = @transform_6, window_bounds = array<i64: 1, 128>}, {transform_indices = @transform_7, window_bounds = array<i64: 16, 128>}]} {
    %c0 = arith.constant 0 : index
    %c0_0 = arith.constant 0 : index
    %0 = vector.load %arg1[%c0, %c0_0] : memref<16x128xf32, #tpu.memory_space<vmem>>, vector<16x128xf32>
    %cst = arith.constant dense<0.000000e+00> : vector<16xf32>
    %1 = vector.multi_reduction <add>, %0, %cst [1] : vector<16x128xf32> to vector<16xf32>
    %2 = vector.shape_cast %1 : vector<16xf32> to vector<16x1xf32>
    %cst_1 = arith.constant 1.280000e+02 : f32
    %3 = vector.broadcast %cst_1 : f32 to vector<16x1xf32>
    %4 = arith.divf %2, %3 : vector<16x1xf32>
    %5 = vector.broadcast %4 : vector<16x1xf32> to vector<16x128xf32>
    %6 = arith.subf %0, %5 : vector<16x128xf32>
    %7 = arith.mulf %6, %6 : vector<16x128xf32>
    %cst_2 = arith.constant dense<0.000000e+00> : vector<16xf32>
    %8 = vector.multi_reduction <add>, %7, %cst_2 [1] : vector<16x128xf32> to vector<16xf32>
    %9 = vector.shape_cast %8 : vector<16xf32> to vector<16x1xf32>
    %cst_3 = arith.constant 1.280000e+02 : f32
    %10 = vector.broadcast %cst_3 : f32 to vector<16x1xf32>
    %11 = arith.divf %9, %10 : vector<16x1xf32>
    %12 = vector.broadcast %4 : vector<16x1xf32> to vector<16x128xf32>
    %13 = arith.subf %0, %12 : vector<16x128xf32>
    %cst_4 = arith.constant 9.99999974E-6 : f32
    %14 = vector.broadcast %cst_4 : f32 to vector<16x1xf32>
    %15 = arith.addf %11, %14 : vector<16x1xf32>
    %16 = math.rsqrt %15 : vector<16x1xf32>
    %17 = vector.broadcast %16 : vector<16x1xf32> to vector<16x128xf32>
    %18 = arith.mulf %13, %17 : vector<16x128xf32>
    %c0_5 = arith.constant 0 : index
    %c0_6 = arith.constant 0 : index
    %19 = vector.load %arg2[%c0_5, %c0_6] : memref<1x128xf32, #tpu.memory_space<vmem>>, vector<1x128xf32>
    %20 = vector.broadcast %19 : vector<1x128xf32> to vector<16x128xf32>
    %21 = arith.mulf %18, %20 : vector<16x128xf32>
    %c0_7 = arith.constant 0 : index
    %c0_8 = arith.constant 0 : index
    %22 = vector.load %arg3[%c0_7, %c0_8] : memref<1x128xf32, #tpu.memory_space<vmem>>, vector<1x128xf32>
    %23 = vector.broadcast %22 : vector<1x128xf32> to vector<16x128xf32>
    %24 = arith.addf %21, %23 : vector<16x128xf32>
    %25 = arith.truncf %24 : vector<16x128xf32> to vector<16x128xbf16>
    %c0_9 = arith.constant 0 : index
    %c0_10 = arith.constant 0 : index
    %26 = vector.load %arg4[%c0_9, %c0_10] : memref<128x512xbf16, #tpu.memory_space<vmem>>, vector<128x512xbf16>
    %cst_11 = arith.constant dense<0.000000e+00> : vector<16x512xf32>
    %27 = tpu.matmul %25, %26, %cst_11 {dimension_numbers = #tpu.dot_dimension_numbers<[1], [0], [0], [1], [0, 0, 1, 1], [], []>} : vector<16x128xbf16>, vector<128x512xbf16>, vector<16x512xf32> -> vector<16x512xf32>
    %c0_12 = arith.constant 0 : index
    %c0_13 = arith.constant 0 : index
    %28 = vector.load %arg5[%c0_12, %c0_13] : memref<1x512xf32, #tpu.memory_space<vmem>>, vector<1x512xf32>
    %29 = vector.broadcast %28 : vector<1x512xf32> to vector<16x512xf32>
    %30 = arith.addf %27, %29 : vector<16x512xf32>
    %31 = arith.mulf %30, %30 : vector<16x512xf32>
    %32 = arith.mulf %30, %31 : vector<16x512xf32>
    %cst_14 = arith.constant 4.471500e-02 : f32
    %33 = vector.broadcast %cst_14 : f32 to vector<16x512xf32>
    %34 = arith.mulf %33, %32 : vector<16x512xf32>
    %35 = arith.addf %30, %34 : vector<16x512xf32>
    %cst_15 = arith.constant 0.797884583 : f32
    %36 = vector.broadcast %cst_15 : f32 to vector<16x512xf32>
    %37 = arith.mulf %36, %35 : vector<16x512xf32>
    %38 = math.tanh %37 : vector<16x512xf32>
    %cst_16 = arith.constant 1.000000e+00 : f32
    %39 = vector.broadcast %cst_16 : f32 to vector<16x512xf32>
    %40 = arith.addf %39, %38 : vector<16x512xf32>
    %cst_17 = arith.constant 5.000000e-01 : f32
    %41 = vector.broadcast %cst_17 : f32 to vector<16x512xf32>
    %42 = arith.mulf %41, %40 : vector<16x512xf32>
    %43 = arith.mulf %30, %42 : vector<16x512xf32>
    %44 = arith.truncf %43 : vector<16x512xf32> to vector<16x512xbf16>
    %c0_18 = arith.constant 0 : index
    %c0_19 = arith.constant 0 : index
    %45 = vector.load %arg6[%c0_18, %c0_19] : memref<512x128xbf16, #tpu.memory_space<vmem>>, vector<512x128xbf16>
    %cst_20 = arith.constant dense<0.000000e+00> : vector<16x128xf32>
    %46 = tpu.matmul %44, %45, %cst_20 {dimension_numbers = #tpu.dot_dimension_numbers<[1], [0], [0], [1], [0, 0, 1, 1], [], []>} : vector<16x512xbf16>, vector<512x128xbf16>, vector<16x128xf32> -> vector<16x128xf32>
    %c0_21 = arith.constant 0 : index
    %c0_22 = arith.constant 0 : index
    %47 = vector.load %arg7[%c0_21, %c0_22] : memref<1x128xf32, #tpu.memory_space<vmem>>, vector<1x128xf32>
    %48 = vector.broadcast %47 : vector<1x128xf32> to vector<16x128xf32>
    %49 = arith.addf %46, %48 : vector<16x128xf32>
    %c0_23 = arith.constant 0 : index
    %c0_24 = arith.constant 0 : index
    %50 = vector.load %arg8[%c0_23, %c0_24] : memref<16x128xf32, #tpu.memory_space<vmem>>, vector<16x128xf32>
    tpu.vector_store %arg8[%c0_23, %c0_24], %49 {strides = array<i32>} : memref<16x128xf32, #tpu.memory_space<vmem>>, vector<16x128xf32>,
    return
  }
  func.func @transform_0(%arg0: i32) -> (i32, i32) {
    %c0_i32 = arith.constant 0 : i32
    %c0_i32_0 = arith.constant 0 : i32
    return %arg0, %c0_i32 : i32, i32
  }
  func.func @transform_1(%arg0: i32) -> (i32, i32) {
    %c0_i32 = arith.constant 0 : i32
    %c0_i32_0 = arith.constant 0 : i32
    %c0_i32_1 = arith.constant 0 : i32
    return %c0_i32, %c0_i32_0 : i32, i32
  }
  func.func @transform_2(%arg0: i32) -> (i32, i32) {
    %c0_i32 = arith.constant 0 : i32
    %c0_i32_0 = arith.constant 0 : i32
    %c0_i32_1 = arith.constant 0 : i32
    return %c0_i32, %c0_i32_0 : i32, i32
  }
  func.func @transform_3(%arg0: i32) -> (i32, i32) {
    %c0_i32 = arith.constant 0 : i32
    %c0_i32_0 = arith.constant 0 : i32
    %c0_i32_1 = arith.constant 0 : i32
    return %c0_i32, %c0_i32_0 : i32, i32
  }
  func.func @transform_4(%arg0: i32) -> (i32, i32) {
    %c0_i32 = arith.constant 0 : i32
    %c0_i32_0 = arith.constant 0 : i32
    %c0_i32_1 = arith.constant 0 : i32
    return %c0_i32, %c0_i32_0 : i32, i32
  }
  func.func @transform_5(%arg0: i32) -> (i32, i32) {
    %c0_i32 = arith.constant 0 : i32
    %c0_i32_0 = arith.constant 0 : i32
    %c0_i32_1 = arith.constant 0 : i32
    return %c0_i32, %c0_i32_0 : i32, i32
  }
  func.func @transform_6(%arg0: i32) -> (i32, i32) {
    %c0_i32 = arith.constant 0 : i32
    %c0_i32_0 = arith.constant 0 : i32
    %c0_i32_1 = arith.constant 0 : i32
    return %c0_i32, %c0_i32_0 : i32, i32
  }
  func.func @transform_7(%arg0: i32) -> (i32, i32) {
    %c0_i32 = arith.constant 0 : i32
    %c0_i32_0 = arith.constant 0 : i32
    return %arg0, %c0_i32 : i32, i32
  }
}

</mosaic_0001>

<llo_original>
// kernel: feed_forward.1
$region0: #{feed_forward.1}
  #allocation0 [shape = 'u32[]', space=smem, size = 0x4, offset = 0x4, fixed_abs, tag = 'smem constant byte address 0x4 - core index']
  #allocation1 [shape = 'u32[144,128]{1,0:T(1,128)}', space=vmem, size = 0x12000, scoped, tag = 'internal scratch']
  %s0 = inlined_call_operand.vmem [shape: f32[16,128], index: 0, kind: input, shape index: {}]
  %s1 = inlined_call_operand.vmem [shape: f32[1,128], index: 1, kind: input, shape index: {}]
  %s2 = inlined_call_operand.vmem [shape: f32[1,128], index: 2, kind: input, shape index: {}]
  %s3 = inlined_call_operand.vmem [shape: bf16[128,512], index: 3, kind: input, shape index: {}]
  %s4 = inlined_call_operand.vmem [shape: f32[1,512], index: 4, kind: input, shape index: {}]
  %s5 = inlined_call_operand.vmem [shape: bf16[512,128], index: 5, kind: input, shape index: {}]
  %s6 = inlined_call_operand.vmem [shape: f32[1,128], index: 6, kind: input, shape index: {}]
  %s7 = inlined_call_operand.hbm [shape: f32[16,128], index: 7, kind: output, shape index: {}]
  %s8 = sld [smem:[#allocation0]]
  $region38: #{feed_forward.1} parent=0
    _
  %s10 = ssub.s32 1, %s8
  %s11 = scalar_select 0, %s10, %s8
  $region1: #{feed_forward.1} parent=0
    #allocation2 [shape = 'u8[8192]{0}', space=vmem, size = 0x2000, scoped, tag = 'output window, operand 0, single buffered']
    #allocation3 [shape = 's32[1]{0}', space=sflag, size = 0x4, scoped, tag = 'scoped memory for feed_forward.1']
    %12 = vsyncpa [#allocation3], 0
    // Predicated region
    $region2: #{feed_forward.1} parent=1 // pred_check
      _
    $region3: #{feed_forward.1} parent=1 // pred_check_branch
      %14 = sbr.rel (0) target = $region5
    $region4: #{feed_forward.1} parent=1 // pred_region
      _
    $region5: #{feed_forward.1} parent=1 // pred_fallthru
      _
    // Predicated region
    $region6: #{feed_forward.1} parent=1 // pred_check
      _
    $region7: #{feed_forward.1} parent=1 // pred_check_branch
      %16 = sbr.rel (0) target = $region9
    $region8: #{feed_forward.1} parent=1 // pred_region
      _
    $region9: #{feed_forward.1} parent=1 // pred_fallthru
      _
    // Predicated region
    $region10: #{feed_forward.1} parent=1 // pred_check
      _
    $region11: #{feed_forward.1} parent=1 // pred_check_branch
      %18 = sbr.rel (0) target = $region13
    $region12: #{feed_forward.1} parent=1 // pred_region
      _
    $region13: #{feed_forward.1} parent=1 // pred_fallthru
      _
    // Predicated region
    $region14: #{feed_forward.1} parent=1 // pred_check
      _
    $region15: #{feed_forward.1} parent=1 // pred_check_branch
      %20 = sbr.rel (0) target = $region17
    $region16: #{feed_forward.1} parent=1 // pred_region
      _
    $region17: #{feed_forward.1} parent=1 // pred_fallthru
      _
    // Predicated region
    $region18: #{feed_forward.1} parent=1 // pred_check
      _
    $region19: #{feed_forward.1} parent=1 // pred_check_branch
      %22 = sbr.rel (0) target = $region21
    $region20: #{feed_forward.1} parent=1 // pred_region
      _
    $region21: #{feed_forward.1} parent=1 // pred_fallthru
      _
    // Predicated region
    $region22: #{feed_forward.1} parent=1 // pred_check
      _
    $region23: #{feed_forward.1} parent=1 // pred_check_branch
      %24 = sbr.rel (0) target = $region25
    $region24: #{feed_forward.1} parent=1 // pred_region
      _
    $region25: #{feed_forward.1} parent=1 // pred_fallthru
      _
    // Predicated region
    $region26: #{feed_forward.1} parent=1 // pred_check
      _
    $region27: #{feed_forward.1} parent=1 // pred_check_branch
      %26 = sbr.rel (0) target = $region29
    $region28: #{feed_forward.1} parent=1 // pred_region
      _
    $region29: #{feed_forward.1} parent=1 // pred_fallthru
      _
    %v28 = vld [vmem:[%s0] sm:$0xff]
    %v29 = vld [vmem:[%s0 + $0x8] sm:$0xff]
    %30 = vadd.xlane.f32.xlu0 %v28
    %v31 = vpop.xlane.xlu0 %30
    %32 = vadd.xlane.f32.xlu0 %v29
    %v33 = vpop.xlane.xlu0 %32
    %v34 = vrcp.pop 128.0
    %v35 = vmul.f32 %v31, %v34
    %v36 = vmul.f32 %v33, %v34
    %v37 = vsub.f32 %v28, %v35
    %v38 = vsub.f32 %v29, %v36
    %v39 = vmul.f32 %v37, %v37
    %v40 = vmul.f32 %v38, %v38
    %41 = vadd.xlane.f32.xlu0 %v39
    %v42 = vpop.xlane.xlu0 %41
    %43 = vadd.xlane.f32.xlu0 %v40
    %v44 = vpop.xlane.xlu0 %43
    %v45 = vmul.f32 %v42, %v34
    %v46 = vmul.f32 %v44, %v34
    %v47 = vadd.f32 %v45, 1e-05
    %v48 = vadd.f32 %v46, 1e-05
    %v49 = vrsqrt.pop %v47
    %v50 = vrsqrt.pop %v48
    %v51 = vmul.f32 %v37, %v49
    %v52 = vmul.f32 %v38, %v50
    %v53 = vld [vmem:[%s1] sm:$0x1]
    %v55 = vlaneseq
    %v56 = vshrl.u32 %v55, 7
    %v57 = vsub.s32 0, %v56
    %v58 = vrot.slane %v53, %v57
    %v60 = vmul.f32 %v51, %v58
    %v61 = vmul.f32 %v52, %v58
    %v62 = vld [vmem:[%s2] sm:$0x1]
    %v64 = vlaneseq
    %v65 = vshrl.u32 %v64, 7
    %v66 = vsub.s32 0, %v65
    %v67 = vrot.slane %v62, %v66
    %v69 = vadd.f32 %v60, %v67
    %v70 = vadd.f32 %v61, %v67
    %v71 = vpack.c.bf16 %v70, %v69
    %v72 = vld [vmem:[%s3] sm:$0xff]
    %v73 = vld [vmem:[%s3 + $0x8] sm:$0xff]
    %v74 = vld [vmem:[%s3 + $0x10] sm:$0xff]
    %v75 = vld [vmem:[%s3 + $0x18] sm:$0xff]
    %v76 = vld [vmem:[%s3 + $0x20] sm:$0xff]
    %v77 = vld [vmem:[%s3 + $0x28] sm:$0xff]
    %v78 = vld [vmem:[%s3 + $0x30] sm:$0xff]
    %v79 = vld [vmem:[%s3 + $0x38] sm:$0xff]
    %v80 = vld [vmem:[%s3 + $0x40] sm:$0xff]
    %v81 = vld [vmem:[%s3 + $0x48] sm:$0xff]
    %v82 = vld [vmem:[%s3 + $0x50] sm:$0xff]
    %v83 = vld [vmem:[%s3 + $0x58] sm:$0xff]
    %v84 = vld [vmem:[%s3 + $0x60] sm:$0xff]
    %v85 = vld [vmem:[%s3 + $0x68] sm:$0xff]
    %v86 = vld [vmem:[%s3 + $0x70] sm:$0xff]
    %v87 = vld [vmem:[%s3 + $0x78] sm:$0xff]
    %v88 = vld [vmem:[%s3 + $0x80] sm:$0xff]
    %v89 = vld [vmem:[%s3 + $0x88] sm:$0xff]
    %v90 = vld [vmem:[%s3 + $0x90] sm:$0xff]
    %v91 = vld [vmem:[%s3 + $0x98] sm:$0xff]
    %v92 = vld [vmem:[%s3 + $0xa0] sm:$0xff]
    %v93 = vld [vmem:[%s3 + $0xa8] sm:$0xff]
    %v94 = vld [vmem:[%s3 + $0xb0] sm:$0xff]
    %v95 = vld [vmem:[%s3 + $0xb8] sm:$0xff]
    %v96 = vld [vmem:[%s3 + $0xc0] sm:$0xff]
    %v97 = vld [vmem:[%s3 + $0xc8] sm:$0xff]
    %v98 = vld [vmem:[%s3 + $0xd0] sm:$0xff]
    %v99 = vld [vmem:[%s3 + $0xd8] sm:$0xff]
    %v100 = vld [vmem:[%s3 + $0xe0] sm:$0xff]
    %v101 = vld [vmem:[%s3 + $0xe8] sm:$0xff]
    %v102 = vld [vmem:[%s3 + $0xf0] sm:$0xff]
    %v103 = vld [vmem:[%s3 + $0xf8] sm:$0xff]
    %v104 = vld [vmem:[%s4] sm:$0xf]
    %v106 = vlaneseq
    %v107 = vshrl.u32 %v106, 7
    %v108 = vsub.s32 0, %v107
    %v109 = vrot.slane %v104, %v108
    %v110 = vlaneseq
    %v111 = vshrl.u32 %v110, 7
    %v112 = vsub.s32 1, %v111
    %v113 = vrot.slane %v104, %v112
    %v114 = vlaneseq
    %v115 = vshrl.u32 %v114, 7
    %v116 = vsub.s32 2, %v115
    %v117 = vrot.slane %v104, %v116
    %v118 = vlaneseq
    %v119 = vshrl.u32 %v118, 7
    %v120 = vsub.s32 3, %v119
    %v121 = vrot.slane %v104, %v120
    %v158 = vunpack.c.l.b16 %v72
    %v159 = vunpack.c.h.b16 %v72
    %v160 = vunpack.c.l.b16 %v73
    %v161 = vunpack.c.h.b16 %v73
    %v162 = vunpack.c.l.b16 %v74
    %v163 = vunpack.c.h.b16 %v74
    %v164 = vunpack.c.l.b16 %v75
    %v165 = vunpack.c.h.b16 %v75
    %v166 = vunpack.c.l.b16 %v76
    %v167 = vunpack.c.h.b16 %v76
    %v168 = vunpack.c.l.b16 %v77
    %v169 = vunpack.c.h.b16 %v77
    %v170 = vunpack.c.l.b16 %v78
    %v171 = vunpack.c.h.b16 %v78
    %v172 = vunpack.c.l.b16 %v79
    %v173 = vunpack.c.h.b16 %v79
    %v174 = vunpack.c.l.b16 %v80
    %v175 = vunpack.c.h.b16 %v80
    %v176 = vunpack.c.l.b16 %v81
    %v177 = vunpack.c.h.b16 %v81
    %v178 = vunpack.c.l.b16 %v82
    %v179 = vunpack.c.h.b16 %v82
    %v180 = vunpack.c.l.b16 %v83
    %v181 = vunpack.c.h.b16 %v83
    %v182 = vunpack.c.l.b16 %v84
    %v183 = vunpack.c.h.b16 %v84
    %v184 = vunpack.c.l.b16 %v85
    %v185 = vunpack.c.h.b16 %v85
    %v186 = vunpack.c.l.b16 %v86
    %v187 = vunpack.c.h.b16 %v86
    %v188 = vunpack.c.l.b16 %v87
    %v189 = vunpack.c.h.b16 %v87
    %v190 = vunpack.c.l.b16 %v88
    %v191 = vunpack.c.h.b16 %v88
    %v192 = vunpack.c.l.b16 %v89
    %v193 = vunpack.c.h.b16 %v89
    %v194 = vunpack.c.l.b16 %v90
    %v195 = vunpack.c.h.b16 %v90
    %v196 = vunpack.c.l.b16 %v91
    %v197 = vunpack.c.h.b16 %v91
    %v198 = vunpack.c.l.b16 %v92
    %v199 = vunpack.c.h.b16 %v92
    %v200 = vunpack.c.l.b16 %v93
    %v201 = vunpack.c.h.b16 %v93
    %v202 = vunpack.c.l.b16 %v94
    %v203 = vunpack.c.h.b16 %v94
    %v204 = vunpack.c.l.b16 %v95
    %v205 = vunpack.c.h.b16 %v95
    %v206 = vunpack.c.l.b16 %v96
    %v207 = vunpack.c.h.b16 %v96
    %v208 = vunpack.c.l.b16 %v97
    %v209 = vunpack.c.h.b16 %v97
    %v210 = vunpack.c.l.b16 %v98
    %v211 = vunpack.c.h.b16 %v98
    %v212 = vunpack.c.l.b16 %v99
    %v213 = vunpack.c.h.b16 %v99
    %v214 = vunpack.c.l.b16 %v100
    %v215 = vunpack.c.h.b16 %v100
    %v216 = vunpack.c.l.b16 %v101
    %v217 = vunpack.c.h.b16 %v101
    %v218 = vunpack.c.l.b16 %v102
    %v219 = vunpack.c.h.b16 %v102
    %v220 = vunpack.c.l.b16 %v103
    %v221 = vunpack.c.h.b16 %v103
    %v222 = vpack.c.b16 %v162, %v158
    %v223 = vpack.c.b16 %v163, %v159
    %v224 = vpack.c.b16 %v164, %v160
    %v225 = vpack.c.b16 %v165, %v161
    %v226 = vpack.c.b16 %v170, %v166
    %v227 = vpack.c.b16 %v171, %v167
    %v228 = vpack.c.b16 %v172, %v168
    %v229 = vpack.c.b16 %v173, %v169
    %v230 = vpack.c.b16 %v178, %v174
    %v231 = vpack.c.b16 %v179, %v175
    %v232 = vpack.c.b16 %v180, %v176
    %v233 = vpack.c.b16 %v181, %v177
    %v234 = vpack.c.b16 %v186, %v182
    %v235 = vpack.c.b16 %v187, %v183
    %v236 = vpack.c.b16 %v188, %v184
    %v237 = vpack.c.b16 %v189, %v185
    %v238 = vpack.c.b16 %v194, %v190
    %v239 = vpack.c.b16 %v195, %v191
    %v240 = vpack.c.b16 %v196, %v192
    %v241 = vpack.c.b16 %v197, %v193
    %v242 = vpack.c.b16 %v202, %v198
    %v243 = vpack.c.b16 %v203, %v199
    %v244 = vpack.c.b16 %v204, %v200
    %v245 = vpack.c.b16 %v205, %v201
    %v246 = vpack.c.b16 %v210, %v206
    %v247 = vpack.c.b16 %v211, %v207
    %v248 = vpack.c.b16 %v212, %v208
    %v249 = vpack.c.b16 %v213, %v209
    %v250 = vpack.c.b16 %v218, %v214
    %v251 = vpack.c.b16 %v219, %v215
    %v252 = vpack.c.b16 %v220, %v216
    %v253 = vpack.c.b16 %v221, %v217
    %286 = vmatprep.subr.bf16.mxu0 %v223
    %287 = vmatpush1.bf16.msra.mxu0 %v222
    %288 = vmatprep.subr.bf16.mxu0 %v227
    %289 = vmatpush1.bf16.msra.mxu0 %v226
    %290 = vmatprep.subr.bf16.mxu0 %v231
    %291 = vmatpush1.bf16.msra.mxu0 %v230
    %292 = vmatprep.subr.bf16.mxu0 %v235
    %293 = vmatpush1.bf16.msra.mxu0 %v234
    %294 = vmatprep.subr.bf16.mxu0 %v239
    %295 = vmatpush1.bf16.msra.mxu0 %v238
    %296 = vmatprep.subr.bf16.mxu0 %v243
    %297 = vmatpush1.bf16.msra.mxu0 %v242
    %298 = vmatprep.subr.bf16.mxu0 %v247
    %299 = vmatpush1.bf16.msra.mxu0 %v246
    %300 = vmatprep.subr.bf16.mxu0 %v251
    %301 = vmatpush1.bf16.msra.mxu0 %v250
    %302 = vmatprep.subr.bf16.mxu0 0
    %303 = vmatpush1.bf16.msra.mxu0 0
    %304 = vmatprep.subr.bf16.mxu0 0
    %305 = vmatpush1.bf16.msra.mxu0 0
    %306 = vmatprep.subr.bf16.mxu0 0
    %307 = vmatpush1.bf16.msra.mxu0 0
    %308 = vmatprep.subr.bf16.mxu0 0
    %309 = vmatpush1.bf16.msra.mxu0 0
    %310 = vmatprep.subr.bf16.mxu0 0
    %311 = vmatpush1.bf16.msra.mxu0 0
    %312 = vmatprep.subr.bf16.mxu0 0
    %313 = vmatpush1.bf16.msra.mxu0 0
    %314 = vmatprep.subr.bf16.mxu0 0
    %315 = vmatpush1.bf16.msra.mxu0 0
    %316 = vmatprep.subr.bf16.mxu0 0
    %317 = vmatpush1.bf16.msra.mxu0 0
    %318 = vmatprep.mubr.bf16.mxu0 0
    %319 = vmatmul.mubr.bf16.gmra.mrb[0].mxu0 %v71
    %v320 = vpop.f32.mrb[0].mxu0
    %v321 = vadd.f32 %v109, %v320
    %v322 = vpop.f32.mrb[0].mxu0
    %v323 = vadd.f32 %v113, %v322
    %v324 = vpop.f32.mrb[0].mxu0
    %v325 = vadd.f32 %v109, %v324
    %v326 = vpop.f32.mrb[0].mxu0
    %v327 = vadd.f32 %v113, %v326
    %328 = vdwg.mxu0
    %329 = vmatprep.subr.bf16.mxu0 %v225
    %330 = vmatpush1.bf16.msra.mxu0 %v224
    %331 = vmatprep.subr.bf16.mxu0 %v229
    %332 = vmatpush1.bf16.msra.mxu0 %v228
    %333 = vmatprep.subr.bf16.mxu0 %v233
    %334 = vmatpush1.bf16.msra.mxu0 %v232
    %335 = vmatprep.subr.bf16.mxu0 %v237
    %336 = vmatpush1.bf16.msra.mxu0 %v236
    %337 = vmatprep.subr.bf16.mxu0 %v241
    %338 = vmatpush1.bf16.msra.mxu0 %v240
    %339 = vmatprep.subr.bf16.mxu0 %v245
    %340 = vmatpush1.bf16.msra.mxu0 %v244
    %341 = vmatprep.subr.bf16.mxu0 %v249
    %342 = vmatpush1.bf16.msra.mxu0 %v248
    %343 = vmatprep.subr.bf16.mxu0 %v253
    %344 = vmatpush1.bf16.msra.mxu0 %v252
    %345 = vmatprep.subr.bf16.mxu0 0
    %346 = vmatpush1.bf16.msra.mxu0 0
    %347 = vmatprep.subr.bf16.mxu0 0
    %348 = vmatpush1.bf16.msra.mxu0 0
    %349 = vmatprep.subr.bf16.mxu0 0
    %350 = vmatpush1.bf16.msra.mxu0 0
    %351 = vmatprep.subr.bf16.mxu0 0
    %352 = vmatpush1.bf16.msra.mxu0 0
    %353 = vmatprep.subr.bf16.mxu0 0
    %354 = vmatpush1.bf16.msra.mxu0 0
    %355 = vmatprep.subr.bf16.mxu0 0
    %356 = vmatpush1.bf16.msra.mxu0 0
    %357 = vmatprep.subr.bf16.mxu0 0
    %358 = vmatpush1.bf16.msra.mxu0 0
    %359 = vmatprep.subr.bf16.mxu0 0
    %360 = vmatpush1.bf16.msra.mxu0 0
    %361 = vmatprep.mubr.bf16.mxu0 0
    %362 = vmatmul.mubr.bf16.gmra.mrb[0].mxu0 %v71
    %v363 = vpop.f32.mrb[0].mxu0
    %v364 = vadd.f32 %v117, %v363
    %v365 = vpop.f32.mrb[0].mxu0
    %v366 = vadd.f32 %v121, %v365
    %v367 = vpop.f32.mrb[0].mxu0
    %v368 = vadd.f32 %v117, %v367
    %v369 = vpop.f32.mrb[0].mxu0
    %v370 = vadd.f32 %v121, %v369
    %371 = vdwg.mxu0
    %v372 = vmul.f32 %v321, %v321
    %v373 = vmul.f32 %v323, %v323
    %v374 = vmul.f32 %v364, %v364
    %v375 = vmul.f32 %v366, %v366
    %v376 = vmul.f32 %v325, %v325
    %v377 = vmul.f32 %v327, %v327
    %v378 = vmul.f32 %v368, %v368
    %v379 = vmul.f32 %v370, %v370
    %v380 = vmul.f32 %v321, %v372
    %v381 = vmul.f32 %v323, %v373
    %v382 = vmul.f32 %v364, %v374
    %v383 = vmul.f32 %v366, %v375
    %v384 = vmul.f32 %v325, %v376
    %v385 = vmul.f32 %v327, %v377
    %v386 = vmul.f32 %v368, %v378
    %v387 = vmul.f32 %v370, %v379
    %v388 = vmul.f32 %v380, 0.044715
    %v389 = vmul.f32 %v381, 0.044715
    %v390 = vmul.f32 %v382, 0.044715
    %v391 = vmul.f32 %v383, 0.044715
    %v392 = vmul.f32 %v384, 0.044715
    %v393 = vmul.f32 %v385, 0.044715
    %v394 = vmul.f32 %v386, 0.044715
    %v395 = vmul.f32 %v387, 0.044715
    %v396 = vadd.f32 %v321, %v388
    %v397 = vadd.f32 %v323, %v389
    %v398 = vadd.f32 %v364, %v390
    %v399 = vadd.f32 %v366, %v391
    %v400 = vadd.f32 %v325, %v392
    %v401 = vadd.f32 %v327, %v393
    %v402 = vadd.f32 %v368, %v394
    %v403 = vadd.f32 %v370, %v395
    %v404 = vmul.f32 %v396, 0.7978846
    %v405 = vmul.f32 %v397, 0.7978846
    %v406 = vmul.f32 %v398, 0.7978846
    %v407 = vmul.f32 %v399, 0.7978846
    %v408 = vmul.f32 %v400, 0.7978846
    %v409 = vmul.f32 %v401, 0.7978846
    %v410 = vmul.f32 %v402, 0.7978846
    %v411 = vmul.f32 %v403, 0.7978846
    %v412 = vtanh.pop %v404
    %v413 = vtanh.pop %v405
    %v414 = vtanh.pop %v406
    %v415 = vtanh.pop %v407
    %v416 = vtanh.pop %v408
    %v417 = vtanh.pop %v409
    %v418 = vtanh.pop %v410
    %v419 = vtanh.pop %v411
    %v420 = vadd.f32 %v412, 1.0
    %v421 = vadd.f32 %v413, 1.0
    %v422 = vadd.f32 %v414, 1.0
    %v423 = vadd.f32 %v415, 1.0
    %v424 = vadd.f32 %v416, 1.0
    %v425 = vadd.f32 %v417, 1.0
    %v426 = vadd.f32 %v418, 1.0
    %v427 = vadd.f32 %v419, 1.0
    %v428 = vmul.f32 %v420, 0.5
    %v429 = vmul.f32 %v421, 0.5
    %v430 = vmul.f32 %v422, 0.5
    %v431 = vmul.f32 %v423, 0.5
    %v432 = vmul.f32 %v424, 0.5
    %v433 = vmul.f32 %v425, 0.5
    %v434 = vmul.f32 %v426, 0.5
    %v435 = vmul.f32 %v427, 0.5
    %v436 = vmul.f32 %v321, %v428
    %v437 = vmul.f32 %v323, %v429
    %v438 = vmul.f32 %v364, %v430
    %v439 = vmul.f32 %v366, %v431
    %v440 = vmul.f32 %v325, %v432
    %v441 = vmul.f32 %v327, %v433
    %v442 = vmul.f32 %v368, %v434
    %v443 = vmul.f32 %v370, %v435
    %v444 = vpack.c.bf16 %v440, %v436
    %v445 = vpack.c.bf16 %v441, %v437
    %v446 = vpack.c.bf16 %v442, %v438
    %v447 = vpack.c.bf16 %v443, %v439
    %v448 = vld [vmem:[%s5] sm:$0xf]
    %v449 = vld [vmem:[%s5 + $0x4] sm:$0xf]
    %v450 = vld [vmem:[%s5 + $0x8] sm:$0xf]
    %v451 = vld [vmem:[%s5 + $0xc] sm:$0xf]
    %v452 = vld [vmem:[%s5 + $0x10] sm:$0xf]
    %v453 = vld [vmem:[%s5 + $0x14] sm:$0xf]
    %v454 = vld [vmem:[%s5 + $0x18] sm:$0xf]
    %v455 = vld [vmem:[%s5 + $0x1c] sm:$0xf]
    %v456 = vld [vmem:[%s5 + $0x20] sm:$0xf]
    %v457 = vld [vmem:[%s5 + $0x24] sm:$0xf]
    %v458 = vld [vmem:[%s5 + $0x28] sm:$0xf]
    %v459 = vld [vmem:[%s5 + $0x2c] sm:$0xf]
    %v460 = vld [vmem:[%s5 + $0x30] sm:$0xf]
    %v461 = vld [vmem:[%s5 + $0x34] sm:$0xf]
    %v462 = vld [vmem:[%s5 + $0x38] sm:$0xf]
    %v463 = vld [vmem:[%s5 + $0x3c] sm:$0xf]
    %v464 = vld [vmem:[%s5 + $0x40] sm:$0xf]
    %v465 = vld [vmem:[%s5 + $0x44] sm:$0xf]
    %v466 = vld [vmem:[%s5 + $0x48] sm:$0xf]
    %v467 = vld [vmem:[%s5 + $0x4c] sm:$0xf]
    %v468 = vld [vmem:[%s5 + $0x50] sm:$0xf]
    %v469 = vld [vmem:[%s5 + $0x54] sm:$0xf]
    %v470 = vld [vmem:[%s5 + $0x58] sm:$0xf]
    %v471 = vld [vmem:[%s5 + $0x5c] sm:$0xf]
    %v472 = vld [vmem:[%s5 + $0x60] sm:$0xf]
    %v473 = vld [vmem:[%s5 + $0x64] sm:$0xf]
    %v474 = vld [vmem:[%s5 + $0x68] sm:$0xf]
    %v475 = vld [vmem:[%s5 + $0x6c] sm:$0xf]
    %v476 = vld [vmem:[%s5 + $0x70] sm:$0xf]
    %v477 = vld [vmem:[%s5 + $0x74] sm:$0xf]
    %v478 = vld [vmem:[%s5 + $0x78] sm:$0xf]
    %v479 = vld [vmem:[%s5 + $0x7c] sm:$0xf]
    %v480 = vld [vmem:[%s5 + $0x80] sm:$0xf]
    %v481 = vld [vmem:[%s5 + $0x84] sm:$0xf]
    %v482 = vld [vmem:[%s5 + $0x88] sm:$0xf]
    %v483 = vld [vmem:[%s5 + $0x8c] sm:$0xf]
    %v484 = vld [vmem:[%s5 + $0x90] sm:$0xf]
    %v485 = vld [vmem:[%s5 + $0x94] sm:$0xf]
    %v486 = vld [vmem:[%s5 + $0x98] sm:$0xf]
    %v487 = vld [vmem:[%s5 + $0x9c] sm:$0xf]
    %v488 = vld [vmem:[%s5 + $0xa0] sm:$0xf]
    %v489 = vld [vmem:[%s5 + $0xa4] sm:$0xf]
    %v490 = vld [vmem:[%s5 + $0xa8] sm:$0xf]
    %v491 = vld [vmem:[%s5 + $0xac] sm:$0xf]
    %v492 = vld [vmem:[%s5 + $0xb0] sm:$0xf]
    %v493 = vld [vmem:[%s5 + $0xb4] sm:$0xf]
    %v494 = vld [vmem:[%s5 + $0xb8] sm:$0xf]
    %v495 = vld [vmem:[%s5 + $0xbc] sm:$0xf]
    %v496 = vld [vmem:[%s5 + $0xc0] sm:$0xf]
    %v497 = vld [vmem:[%s5 + $0xc4] sm:$0xf]
    %v498 = vld [vmem:[%s5 + $0xc8] sm:$0xf]
    %v499 = vld [vmem:[%s5 + $0xcc] sm:$0xf]
    %v500 = vld [vmem:[%s5 + $0xd0] sm:$0xf]
    %v501 = vld [vmem:[%s5 + $0xd4] sm:$0xf]
    %v502 = vld [vmem:[%s5 + $0xd8] sm:$0xf]
    %v503 = vld [vmem:[%s5 + $0xdc] sm:$0xf]
    %v504 = vld [vmem:[%s5 + $0xe0] sm:$0xf]
    %v505 = vld [vmem:[%s5 + $0xe4] sm:$0xf]
    %v506 = vld [vmem:[%s5 + $0xe8] sm:$0xf]
    %v507 = vld [vmem:[%s5 + $0xec] sm:$0xf]
    %v508 = vld [vmem:[%s5 + $0xf0] sm:$0xf]
    %v509 = vld [vmem:[%s5 + $0xf4] sm:$0xf]
    %v510 = vld [vmem:[%s5 + $0xf8] sm:$0xf]
    %v511 = vld [vmem:[%s5 + $0xfc] sm:$0xf]
    %v512 = vld [vmem:[%s6] sm:$0x1]
    %v514 = vlaneseq
    %v515 = vshrl.u32 %v514, 7
    %v516 = vsub.s32 0, %v515
    %v517 = vrot.slane %v512, %v516
    %v583 = vunpack.c.l.b16 %v448
    %v584 = vunpack.c.l.b16 %v449
    %v585 = vunpack.c.l.b16 %v450
    %v586 = vunpack.c.l.b16 %v451
    %v587 = vunpack.c.l.b16 %v452
    %v588 = vunpack.c.l.b16 %v453
    %v589 = vunpack.c.l.b16 %v454
    %v590 = vunpack.c.l.b16 %v455
    %v591 = vunpack.c.l.b16 %v456
    %v592 = vunpack.c.l.b16 %v457
    %v593 = vunpack.c.l.b16 %v458
    %v594 = vunpack.c.l.b16 %v459
    %v595 = vunpack.c.l.b16 %v460
    %v596 = vunpack.c.l.b16 %v461
    %v597 = vunpack.c.l.b16 %v462
    %v598 = vunpack.c.l.b16 %v463
    %v599 = vunpack.c.l.b16 %v464
    %v600 = vunpack.c.l.b16 %v465
    %v601 = vunpack.c.l.b16 %v466
    %v602 = vunpack.c.l.b16 %v467
    %v603 = vunpack.c.l.b16 %v468
    %v604 = vunpack.c.l.b16 %v469
    %v605 = vunpack.c.l.b16 %v470
    %v606 = vunpack.c.l.b16 %v471
    %v607 = vunpack.c.l.b16 %v472
    %v608 = vunpack.c.l.b16 %v473
    %v609 = vunpack.c.l.b16 %v474
    %v610 = vunpack.c.l.b16 %v475
    %v611 = vunpack.c.l.b16 %v476
    %v612 = vunpack.c.l.b16 %v477
    %v613 = vunpack.c.l.b16 %v478
    %v614 = vunpack.c.l.b16 %v479
    %v615 = vunpack.c.l.b16 %v480
    %v616 = vunpack.c.l.b16 %v481
    %v617 = vunpack.c.l.b16 %v482
    %v618 = vunpack.c.l.b16 %v483
    %v619 = vunpack.c.l.b16 %v484
    %v620 = vunpack.c.l.b16 %v485
    %v621 = vunpack.c.l.b16 %v486
    %v622 = vunpack.c.l.b16 %v487
    %v623 = vunpack.c.l.b16 %v488
    %v624 = vunpack.c.l.b16 %v489
    %v625 = vunpack.c.l.b16 %v490
    %v626 = vunpack.c.l.b16 %v491
    %v627 = vunpack.c.l.b16 %v492
    %v628 = vunpack.c.l.b16 %v493
    %v629 = vunpack.c.l.b16 %v494
    %v630 = vunpack.c.l.b16 %v495
    %v631 = vunpack.c.l.b16 %v496
    %v632 = vunpack.c.l.b16 %v497
    %v633 = vunpack.c.l.b16 %v498
    %v634 = vunpack.c.l.b16 %v499
    %v635 = vunpack.c.l.b16 %v500
    %v636 = vunpack.c.l.b16 %v501
    %v637 = vunpack.c.l.b16 %v502
    %v638 = vunpack.c.l.b16 %v503
    %v639 = vunpack.c.l.b16 %v504
    %v640 = vunpack.c.l.b16 %v505
    %v641 = vunpack.c.l.b16 %v506
    %v642 = vunpack.c.l.b16 %v507
    %v643 = vunpack.c.l.b16 %v508
    %v644 = vunpack.c.l.b16 %v509
    %v645 = vunpack.c.l.b16 %v510
    %v646 = vunpack.c.l.b16 %v511
    %v647 = vpack.c.b16 %v584, %v583
    %v648 = vpack.c.b16 %v586, %v585
    %v649 = vpack.c.b16 %v588, %v587
    %v650 = vpack.c.b16 %v590, %v589
    %v651 = vpack.c.b16 %v592, %v591
    %v652 = vpack.c.b16 %v594, %v593
    %v653 = vpack.c.b16 %v596, %v595
    %v654 = vpack.c.b16 %v598, %v597
    %v655 = vpack.c.b16 %v600, %v599
    %v656 = vpack.c.b16 %v602, %v601
    %v657 = vpack.c.b16 %v604, %v603
    %v658 = vpack.c.b16 %v606, %v605
    %v659 = vpack.c.b16 %v608, %v607
    %v660 = vpack.c.b16 %v610, %v609
    %v661 = vpack.c.b16 %v612, %v611
    %v662 = vpack.c.b16 %v614, %v613
    %v663 = vpack.c.b16 %v616, %v615
    %v664 = vpack.c.b16 %v618, %v617
    %v665 = vpack.c.b16 %v620, %v619
    %v666 = vpack.c.b16 %v622, %v621
    %v667 = vpack.c.b16 %v624, %v623
    %v668 = vpack.c.b16 %v626, %v625
    %v669 = vpack.c.b16 %v628, %v627
    %v670 = vpack.c.b16 %v630, %v629
    %v671 = vpack.c.b16 %v632, %v631
    %v672 = vpack.c.b16 %v634, %v633
    %v673 = vpack.c.b16 %v636, %v635
    %v674 = vpack.c.b16 %v638, %v637
    %v675 = vpack.c.b16 %v640, %v639
    %v676 = vpack.c.b16 %v642, %v641
    %v677 = vpack.c.b16 %v644, %v643
    %v678 = vpack.c.b16 %v646, %v645
    %711 = vmatprep.subr.bf16.mxu0 0
    %712 = vmatpush1.bf16.msra.mxu0 %v647
    %713 = vmatprep.subr.bf16.mxu0 0
    %714 = vmatpush1.bf16.msra.mxu0 %v648
    %715 = vmatprep.subr.bf16.mxu0 0
    %716 = vmatpush1.bf16.msra.mxu0 %v649
    %717 = vmatprep.subr.bf16.mxu0 0
    %718 = vmatpush1.bf16.msra.mxu0 %v650
    %719 = vmatprep.subr.bf16.mxu0 0
    %720 = vmatpush1.bf16.msra.mxu0 %v651
    %721 = vmatprep.subr.bf16.mxu0 0
    %722 = vmatpush1.bf16.msra.mxu0 %v652
    %723 = vmatprep.subr.bf16.mxu0 0
    %724 = vmatpush1.bf16.msra.mxu0 %v653
    %725 = vmatprep.subr.bf16.mxu0 0
    %726 = vmatpush1.bf16.msra.mxu0 %v654
    %727 = vmatprep.subr.bf16.mxu0 0
    %728 = vmatpush1.bf16.msra.mxu0 %v655
    %729 = vmatprep.subr.bf16.mxu0 0
    %730 = vmatpush1.bf16.msra.mxu0 %v656
    %731 = vmatprep.subr.bf16.mxu0 0
    %732 = vmatpush1.bf16.msra.mxu0 %v657
    %733 = vmatprep.subr.bf16.mxu0 0
    %734 = vmatpush1.bf16.msra.mxu0 %v658
    %735 = vmatprep.subr.bf16.mxu0 0
    %736 = vmatpush1.bf16.msra.mxu0 %v659
    %737 = vmatprep.subr.bf16.mxu0 0
    %738 = vmatpush1.bf16.msra.mxu0 %v660
    %739 = vmatprep.subr.bf16.mxu0 0
    %740 = vmatpush1.bf16.msra.mxu0 %v661
    %741 = vmatprep.subr.bf16.mxu0 0
    %742 = vmatpush1.bf16.msra.mxu0 %v662
    %743 = vmatprep.mubr.bf16.mxu0 %v445
    %744 = vmatmul.mubr.bf16.gmra.mrb[0].mxu0 %v444
    %v745 = vpop.f32.mrb[0].mxu0
    %v746 = vadd.f32 %v517, %v745
    %v747 = vpop.f32.mrb[0].mxu0
    %v748 = vpop.f32.mrb[0].mxu0
    %v749 = vadd.f32 %v517, %v748
    %v750 = vpop.f32.mrb[0].mxu0
    %751 = vdwg.mxu0
    %752 = vmatprep.subr.bf16.mxu0 0
    %753 = vmatpush1.bf16.msra.mxu0 %v663
    %754 = vmatprep.subr.bf16.mxu0 0
    %755 = vmatpush1.bf16.msra.mxu0 %v664
    %756 = vmatprep.subr.bf16.mxu0 0
    %757 = vmatpush1.bf16.msra.mxu0 %v665
    %758 = vmatprep.subr.bf16.mxu0 0
    %759 = vmatpush1.bf16.msra.mxu0 %v666
    %760 = vmatprep.subr.bf16.mxu0 0
    %761 = vmatpush1.bf16.msra.mxu0 %v667
    %762 = vmatprep.subr.bf16.mxu0 0
    %763 = vmatpush1.bf16.msra.mxu0 %v668
    %764 = vmatprep.subr.bf16.mxu0 0
    %765 = vmatpush1.bf16.msra.mxu0 %v669
    %766 = vmatprep.subr.bf16.mxu0 0
    %767 = vmatpush1.bf16.msra.mxu0 %v670
    %768 = vmatprep.subr.bf16.mxu0 0
    %769 = vmatpush1.bf16.msra.mxu0 %v671
    %770 = vmatprep.subr.bf16.mxu0 0
    %771 = vmatpush1.bf16.msra.mxu0 %v672
    %772 = vmatprep.subr.bf16.mxu0 0
    %773 = vmatpush1.bf16.msra.mxu0 %v673
    %774 = vmatprep.subr.bf16.mxu0 0
    %775 = vmatpush1.bf16.msra.mxu0 %v674
    %776 = vmatprep.subr.bf16.mxu0 0
    %777 = vmatpush1.bf16.msra.mxu0 %v675
    %778 = vmatprep.subr.bf16.mxu0 0
    %779 = vmatpush1.bf16.msra.mxu0 %v676
    %780 = vmatprep.subr.bf16.mxu0 0
    %781 = vmatpush1.bf16.msra.mxu0 %v677
    %782 = vmatprep.subr.bf16.mxu0 0
    %783 = vmatpush1.bf16.msra.mxu0 %v678
    %784 = vmatprep.mubr.bf16.mxu0 %v447
    %785 = vmatmul.mubr.bf16.gmra.mrb[0].mxu0 %v446
    %v786 = vpop.f32.mrb[0].mxu0
    %v787 = vadd.f32 %v746, %v786
    %v788 = vpop.f32.mrb[0].mxu0
    %v789 = vpop.f32.mrb[0].mxu0
    %v790 = vadd.f32 %v749, %v789
    %v791 = vpop.f32.mrb[0].mxu0
    %792 = vdwg.mxu0
    %793 = vst [vmem:[#allocation2] sm:$0xff] %v787
    %794 = vst [vmem:[#allocation2 + $0x8] sm:$0xff] %v790
    // Predicated region
    $region30: #{feed_forward.1} parent=1 // pred_check
      _
    $region31: #{feed_forward.1} parent=1 // pred_check_branch
      %796 = sbr.rel (0) target = $region33
    $region32: #{feed_forward.1} parent=1 // pred_region
      %s798 = ssub.s32 256, 256
      %799 = vsyncadd [#allocation3], %s798
      %s800 = sshll.u32 [#allocation2], 4
      %s801 = int_to_ptr.vmem [resolvable:$true] %s800
      %806 = dma.vmem_to_hbm [thread:$0]  %s801, 256, %s7, [#allocation3], 128, 128, 8
    $region33: #{feed_forward.1} parent=1 // pred_fallthru
      _
    // Predicated region
    $region34: #{feed_forward.1} parent=1 // pred_check
      _
    $region35: #{feed_forward.1} parent=1 // pred_check_branch
      %808 = sbr.rel (0) target = $region37
    $region36: #{feed_forward.1} parent=1 // pred_region
      %809 = dma.done [#allocation3], 256
    $region37: #{feed_forward.1} parent=1 // pred_fallthru
      _
    %810 = vsyncpa [#allocation3], 1

</llo_original>
